<compile_context>
chip_gen: v6e
topology: v6e:2x2x1
jax: 0.10.0
libtpu: 0.0.40
codegen_flags: <defaults>
</compile_context>

<pallas_src>
import functools

import jax
import jax.numpy as jnp
from jax.experimental import pallas as pl
from jax.experimental.pallas import tpu as pltpu


def _round_up(n, m):
    return ((n + m - 1) // m) * m


def edm_kernel(x_ref, sigma_ref, w_ref, bias_ref, o_ref, *,
               sigma_data, d_pad, h_pad):
    # x_ref:     (TB, Dp)        lane-dense (Dp multiple of 128)
    # sigma_ref: (TB, 1)
    # w_ref:     (Dp + Hp, L)    packed [w1 ; w2] weight slab
    # bias_ref:  (8, L)          rows: 0 = b1, 1 = wt (noise embed), 2 = b2
    x = x_ref[...]                       # (TB, Dp) f32
    sigma = sigma_ref[...]               # (TB, 1)  f32

    sd2 = jnp.float32(sigma_data * sigma_data)
    denom = sigma * sigma + sd2                       # sigma^2 + sigma_data^2
    inv_sqrt_denom = jax.lax.rsqrt(denom)             # 1/sqrt(denom)  (EUP)
    c_skip = sd2 * inv_sqrt_denom * inv_sqrt_denom    # sd2 / denom (no divide)
    c_out = sigma * jnp.float32(sigma_data) * inv_sqrt_denom
    c_in = inv_sqrt_denom
    c_noise = jnp.log(sigma) * jnp.float32(0.25)      # sigma > 0 by sampler

    # Static, tile-aligned views into the packed parameter slabs.
    bias = bias_ref[...]                              # (8, L) -> 1 vreg row set
    b1 = bias[0:1, :h_pad]                            # (1, Hp)
    wt = bias[1:2, :h_pad]                            # (1, Hp)
    b2 = bias[2:3, :d_pad]                            # (1, Dp)
    w1 = w_ref[0:d_pad, :h_pad]                       # (Dp, Hp)
    w2 = w_ref[d_pad:d_pad + h_pad, :d_pad]           # (Hp, Dp)

    # ---- net(c_in * x, c_noise): tiny 2-layer MLP on the MXU ----
    xin = c_in * x                                    # (TB, Dp)
    h = jnp.dot(xin, w1, preferred_element_type=jnp.float32)
    h = h + b1 + c_noise * wt                         # (TB, Hp)
    # SiLU: h * sigmoid(h) = h / (1 + exp(-h)); divide -> EUP approx recip.
    h = h * pl.reciprocal(1.0 + jnp.exp(-h), approx=True)
    fx = jnp.dot(h, w2, preferred_element_type=jnp.float32) + b2   # (TB, Dp)

    o_ref[...] = c_out * fx + c_skip * x


def edm_forward(x, sigma, params, *, sigma_data, batch_tile=None):
    """EDM preconditioned forward.  x: (B, D) f32, sigma: (B, 1) f32."""
    B, D = x.shape
    H = params["w1"].shape[1]

    Dp = _round_up(D, 128)        # lane-dense feature dim
    Hp = _round_up(H, 128)        # lane-dense hidden dim
    L = max(Dp, Hp)               # shared lane width of the parameter slabs
    Bp = _round_up(B, 8)          # sublane-aligned batch

    f32 = jnp.float32

    # Zero-padded, lane-dense activation slabs.  Padding lanes stay exactly 0
    # through the whole kernel (weights/biases are zero-padded too), so the
    # final [:B, :D] slice recovers the exact unpadded result.
    x_p = jnp.zeros((Bp, Dp), f32).at[:B, :D].set(x.astype(f32))
    # Padded sigma rows get 1.0 so log() stays finite; their outputs are dropped.
    sigma_p = jnp.ones((Bp, 1), f32).at[:B, :].set(sigma.astype(f32))

    # Pack w1 (D,H) and w2 (H,D) into one contiguous slab  -> single DMA.
    w_slab = jnp.zeros((Dp + Hp, L), f32)
    w_slab = w_slab.at[:D, :H].set(params["w1"].astype(f32))
    w_slab = w_slab.at[Dp:Dp + H, :D].set(params["w2"].astype(f32))

    # Pack b1 / wt / b2 into one (8, L) bias slab  -> single DMA.
    bias_slab = jnp.zeros((8, L), f32)
    bias_slab = bias_slab.at[0, :H].set(params["b1"].reshape(-1).astype(f32))
    bias_slab = bias_slab.at[1, :H].set(params["wt"].reshape(-1).astype(f32))
    bias_slab = bias_slab.at[2, :D].set(params["b2"].reshape(-1).astype(f32))

    kernel = functools.partial(edm_kernel, sigma_data=float(sigma_data),
                               d_pad=Dp, h_pad=Hp)

    # Choose batch tiling: grid-less single block when everything fits,
    # else a batch grid marked "parallel" (shards across v7x's 2 TCs).
    if batch_tile is None:
        tb = Bp
    else:
        tb = min(_round_up(batch_tile, 8), Bp)
        if Bp % tb != 0:
            tb = Bp
    num_tiles = Bp // tb

    # TODO(synk): for a real sampling loop, keep the weight slabs VMEM-resident
    # across steps (cross-call prefetch, P10) instead of re-DMAing per call.

    if num_tiles == 1:
        vmem = pl.BlockSpec(memory_space=pltpu.MemorySpace.VMEM)
        out_p = pl.pallas_call(
            kernel,
            out_shape=jax.ShapeDtypeStruct((Bp, Dp), f32),
            in_specs=[vmem, vmem, vmem, vmem],
            out_specs=vmem,
        )(x_p, sigma_p, w_slab, bias_slab)
    else:
        out_p = pl.pallas_call(
            kernel,
            out_shape=jax.ShapeDtypeStruct((Bp, Dp), f32),
            grid=(num_tiles,),
            in_specs=[
                pl.BlockSpec((tb, Dp), lambda i: (i, 0)),        # x tile
                pl.BlockSpec((tb, 1), lambda i: (i, 0)),         # sigma tile
                pl.BlockSpec((Dp + Hp, L), lambda i: (0, 0)),    # weights (resident)
                pl.BlockSpec((8, L), lambda i: (0, 0)),          # biases  (resident)
            ],
            out_specs=pl.BlockSpec((tb, Dp), lambda i: (i, 0)),
            compiler_params=pltpu.CompilerParams(
                dimension_semantics=("parallel",)),
        )(x_p, sigma_p, w_slab, bias_slab)

    return out_p[:B, :D]


def edm_reference(x, sigma, params, *, sigma_data):
    """Pure-JAX reference (mirrors the PyTorch EDM.forward with the MLP net)."""
    sd2 = sigma_data ** 2
    c_skip = sd2 / (sigma ** 2 + sd2)
    c_out = sigma * sigma_data / jnp.sqrt(sigma ** 2 + sd2)
    c_in = 1.0 / jnp.sqrt(sd2 + sigma ** 2)
    c_noise = jnp.log(sigma) / 4.0
    h = (c_in * x) @ params["w1"] + params["b1"] + c_noise * params["wt"]
    h = h * jax.nn.sigmoid(h)
    fx = h @ params["w2"] + params["b2"]
    return c_out * fx + c_skip * x


def make_params(key, d, h):
    k1, k2, k3 = jax.random.split(key, 3)
    return {
        "w1": jax.random.normal(k1, (d, h), jnp.float32) / jnp.sqrt(d),
        "b1": jnp.zeros((1, h), jnp.float32),
        "wt": jax.random.normal(k2, (1, h), jnp.float32) * 0.1,
        "w2": jax.random.normal(k3, (h, d), jnp.float32) / jnp.sqrt(h),
        "b2": jnp.zeros((1, d), jnp.float32),
    }


if __name__ == "__main__":
    sigma_min, sigma_max, sigma_data = 0.002, 80.0, 0.5

    B, D, H = 8, 16, 32
    key = jax.random.PRNGKey(0)
    kx, ks, kp = jax.random.split(key, 3)

    x = jax.random.normal(kx, (B, D), jnp.float32)
    # deterministic positive sigmas in [sigma_min, sigma_max]
    sigma = jnp.exp(
        jax.random.uniform(ks, (B, 1), jnp.float32,
                           jnp.log(sigma_min), jnp.log(sigma_max)))
    params = make_params(kp, D, H)

    # 1) Small batch -> grid-less single-block call.
    fwd = jax.jit(functools.partial(edm_forward, sigma_data=sigma_data))
    out = jax.block_until_ready(fwd(x, sigma, params))
    ref = edm_reference(x, sigma, params, sigma_data=sigma_data)
    assert out.shape == (B, D) and out.dtype == jnp.float32
    assert bool(jnp.allclose(out, ref, rtol=1e-2, atol=1e-2)), \
        float(jnp.max(jnp.abs(out - ref)))

    # 2) Larger batch -> batch-tiled grid marked "parallel" (v7x dual-TC path).
    B2 = 32
    kx2, ks2 = jax.random.split(jax.random.PRNGKey(1), 2)
    x2 = jax.random.normal(kx2, (B2, D), jnp.float32)
    sigma2 = jnp.exp(
        jax.random.uniform(ks2, (B2, 1), jnp.float32,
                           jnp.log(sigma_min), jnp.log(sigma_max)))
    fwd_tiled = jax.jit(functools.partial(edm_forward, sigma_data=sigma_data,
                                          batch_tile=16))
    out2 = jax.block_until_ready(fwd_tiled(x2, sigma2, params))
    ref2 = edm_reference(x2, sigma2, params, sigma_data=sigma_data)
    assert bool(jnp.allclose(out2, ref2, rtol=1e-2, atol=1e-2))

    print("KERNEL_OK")
</pallas_src>

<mosaic_0001>
module attributes {stable_mosaic.version = 11 : i64} {
  func.func @edm_kernel(%arg0: memref<8x128xf32, #tpu.memory_space<vmem>>, %arg1: memref<8x1xf32, #tpu.memory_space<vmem>>, %arg2: memref<256x128xf32, #tpu.memory_space<vmem>>, %arg3: memref<8x128xf32, #tpu.memory_space<vmem>>, %arg4: memref<8x128xf32, #tpu.memory_space<vmem>>) attributes {dimension_semantics = [], scalar_prefetch = 0 : i64, scratch_operands = 0 : i64, tpu.core_type = #tpu.core_type<tc>} {
    %c0 = arith.constant 0 : index
    %c0_0 = arith.constant 0 : index
    %0 = vector.load %arg0[%c0, %c0_0] : memref<8x128xf32, #tpu.memory_space<vmem>>, vector<8x128xf32>
    %c0_1 = arith.constant 0 : index
    %c0_2 = arith.constant 0 : index
    %1 = vector.load %arg1[%c0_1, %c0_2] : memref<8x1xf32, #tpu.memory_space<vmem>>, vector<8x1xf32>
    %2 = arith.mulf %1, %1 : vector<8x1xf32>
    %cst = arith.constant 2.500000e-01 : f32
    %3 = vector.broadcast %cst : f32 to vector<8x1xf32>
    %4 = arith.addf %2, %3 : vector<8x1xf32>
    %5 = math.rsqrt %4 : vector<8x1xf32>
    %cst_3 = arith.constant 2.500000e-01 : f32
    %6 = vector.broadcast %cst_3 : f32 to vector<8x1xf32>
    %7 = arith.mulf %6, %5 : vector<8x1xf32>
    %8 = arith.mulf %7, %5 : vector<8x1xf32>
    %cst_4 = arith.constant 5.000000e-01 : f32
    %9 = vector.broadcast %cst_4 : f32 to vector<8x1xf32>
    %10 = arith.mulf %1, %9 : vector<8x1xf32>
    %11 = arith.mulf %10, %5 : vector<8x1xf32>
    %12 = math.log %1 : vector<8x1xf32>
    %cst_5 = arith.constant 2.500000e-01 : f32
    %13 = vector.broadcast %cst_5 : f32 to vector<8x1xf32>
    %14 = arith.mulf %12, %13 : vector<8x1xf32>
    %c0_6 = arith.constant 0 : index
    %c0_7 = arith.constant 0 : index
    %15 = vector.load %arg3[%c0_6, %c0_7] : memref<8x128xf32, #tpu.memory_space<vmem>>, vector<8x128xf32>
    %16 = vector.extract_strided_slice %15 {offsets = [0, 0], sizes = [1, 128], strides = [1, 1]} : vector<8x128xf32> to vector<1x128xf32>
    %17 = vector.extract_strided_slice %15 {offsets = [1, 0], sizes = [1, 128], strides = [1, 1]} : vector<8x128xf32> to vector<1x128xf32>
    %18 = vector.extract_strided_slice %15 {offsets = [2, 0], sizes = [1, 128], strides = [1, 1]} : vector<8x128xf32> to vector<1x128xf32>
    %c0_8 = arith.constant 0 : index
    %c0_9 = arith.constant 0 : index
    %19 = vector.load %arg2[%c0_8, %c0_9] : memref<256x128xf32, #tpu.memory_space<vmem>>, vector<128x128xf32>
    %c128 = arith.constant 128 : index
    %c0_10 = arith.constant 0 : index
    %20 = vector.load %arg2[%c128, %c0_10] : memref<256x128xf32, #tpu.memory_space<vmem>>, vector<128x128xf32>
    %21 = vector.broadcast %5 : vector<8x1xf32> to vector<8x128xf32>
    %22 = arith.mulf %21, %0 : vector<8x128xf32>
    %cst_11 = arith.constant dense<0.000000e+00> : vector<8x128xf32>
    %23 = tpu.matmul %22, %19, %cst_11 {dimension_numbers = #tpu.dot_dimension_numbers<[1], [0], [0], [1], [0, 0, 1, 1], [], []>} : vector<8x128xf32>, vector<128x128xf32>, vector<8x128xf32> -> vector<8x128xf32>
    %24 = vector.broadcast %16 : vector<1x128xf32> to vector<8x128xf32>
    %25 = arith.addf %23, %24 : vector<8x128xf32>
    %26 = vector.broadcast %14 : vector<8x1xf32> to vector<8x128xf32>
    %27 = vector.broadcast %17 : vector<1x128xf32> to vector<8x128xf32>
    %28 = arith.mulf %26, %27 : vector<8x128xf32>
    %29 = arith.addf %25, %28 : vector<8x128xf32>
    %cst_12 = arith.constant 0.000000e+00 : f32
    %30 = vector.broadcast %cst_12 : f32 to vector<8x128xf32>
    %31 = arith.subf %30, %29 : vector<8x128xf32>
    %32 = math.exp %31 : vector<8x128xf32>
    %cst_13 = arith.constant 1.000000e+00 : f32
    %33 = vector.broadcast %cst_13 : f32 to vector<8x128xf32>
    %34 = arith.addf %33, %32 : vector<8x128xf32>
    %35 = tpu.reciprocal %34 {approx = true} : vector<8x128xf32> -> vector<8x128xf32>
    %36 = arith.mulf %29, %35 : vector<8x128xf32>
    %cst_14 = arith.constant dense<0.000000e+00> : vector<8x128xf32>
    %37 = tpu.matmul %36, %20, %cst_14 {dimension_numbers = #tpu.dot_dimension_numbers<[1], [0], [0], [1], [0, 0, 1, 1], [], []>} : vector<8x128xf32>, vector<128x128xf32>, vector<8x128xf32> -> vector<8x128xf32>
    %38 = vector.broadcast %18 : vector<1x128xf32> to vector<8x128xf32>
    %39 = arith.addf %37, %38 : vector<8x128xf32>
    %40 = vector.broadcast %11 : vector<8x1xf32> to vector<8x128xf32>
    %41 = arith.mulf %40, %39 : vector<8x128xf32>
    %42 = vector.broadcast %8 : vector<8x1xf32> to vector<8x128xf32>
    %43 = arith.mulf %42, %0 : vector<8x128xf32>
    %44 = arith.addf %41, %43 : vector<8x128xf32>
    %c0_15 = arith.constant 0 : index
    %c0_16 = arith.constant 0 : index
    %45 = vector.load %arg4[%c0_15, %c0_16] : memref<8x128xf32, #tpu.memory_space<vmem>>, vector<8x128xf32>
    tpu.vector_store %arg4[%c0_15, %c0_16], %44 {strides = array<i32>} : memref<8x128xf32, #tpu.memory_space<vmem>>, vector<8x128xf32>,
    return
  }
}

</mosaic_0001>

<llo_original>
// kernel: edm_forward.1
$region0: #{edm_forward.1}
  #allocation0 [shape = 'u32[]', space=smem, size = 0x4, offset = 0x4, fixed_abs, tag = 'smem constant byte address 0x4 - core index']
  #allocation1 [shape = 'u32[144,128]{1,0:T(1,128)}', space=vmem, size = 0x12000, scoped, tag = 'internal scratch']
  %s0 = inlined_call_operand.vmem [shape: f32[8,128], index: 0, kind: input, shape index: {}]
  %s1 = inlined_call_operand.vmem [shape: f32[8,1], index: 1, kind: input, shape index: {}]
  %s2 = inlined_call_operand.vmem [shape: f32[256,128], index: 2, kind: input, shape index: {}]
  %s3 = inlined_call_operand.vmem [shape: f32[8,128], index: 3, kind: input, shape index: {}]
  %s4 = inlined_call_operand.hbm [shape: f32[8,128], index: 4, kind: output, shape index: {}]
  %s5 = sld [smem:[#allocation0]]
  $region26: #{edm_forward.1} parent=0
    _
  %s7 = ssub.s32 1, %s5
  %s8 = scalar_select 0, %s7, %s5
  $region1: #{edm_forward.1} parent=0
    #allocation2 [shape = 'u8[4096]{0}', space=vmem, size = 0x1000, scoped, tag = 'output window, operand 0, single buffered']
    #allocation3 [shape = 's32[1]{0}', space=sflag, size = 0x4, scoped, tag = 'scoped memory for edm_forward.1']
    %9 = vsyncpa [#allocation3], 0
    // Predicated region
    $region2: #{edm_forward.1} parent=1 // pred_check
      _
    $region3: #{edm_forward.1} parent=1 // pred_check_branch
      %11 = sbr.rel (0) target = $region5
    $region4: #{edm_forward.1} parent=1 // pred_region
      _
    $region5: #{edm_forward.1} parent=1 // pred_fallthru
      _
    // Predicated region
    $region6: #{edm_forward.1} parent=1 // pred_check
      _
    $region7: #{edm_forward.1} parent=1 // pred_check_branch
      %13 = sbr.rel (0) target = $region9
    $region8: #{edm_forward.1} parent=1 // pred_region
      _
    $region9: #{edm_forward.1} parent=1 // pred_fallthru
      _
    // Predicated region
    $region10: #{edm_forward.1} parent=1 // pred_check
      _
    $region11: #{edm_forward.1} parent=1 // pred_check_branch
      %15 = sbr.rel (0) target = $region13
    $region12: #{edm_forward.1} parent=1 // pred_region
      _
    $region13: #{edm_forward.1} parent=1 // pred_fallthru
      _
    // Predicated region
    $region14: #{edm_forward.1} parent=1 // pred_check
      _
    $region15: #{edm_forward.1} parent=1 // pred_check_branch
      %17 = sbr.rel (0) target = $region17
    $region16: #{edm_forward.1} parent=1 // pred_region
      _
    $region17: #{edm_forward.1} parent=1 // pred_fallthru
      _
    %v18 = vld [vmem:[%s0] sm:$0xff]
    %v19 = vld [vmem:[%s1] sm:$0xff]
    %v20 = vmul.f32 %v19, %v19
    %v21 = vadd.f32 %v20, 0.25
    %v22 = vrsqrt.pop %v21
    %v23 = vmul.f32 %v22, 0.25
    %v24 = vmul.f32 %v23, %v22
    %v25 = vmul.f32 %v19, 0.5
    %v26 = vmul.f32 %v25, %v22
    %v27 = vlog2.pop %v19
    %v28 = vmul.f32 %v27, 0.6931472
    %v29 = vmul.f32 %v28, 0.25
    %v30 = vld [vmem:[%s3] sm:$0xff]
    %v31 = vld [vmem:[%s2] sm:$0xff]
    %v32 = vld [vmem:[%s2 + $0x8] sm:$0xff]
    %v33 = vld [vmem:[%s2 + $0x10] sm:$0xff]
    %v34 = vld [vmem:[%s2 + $0x18] sm:$0xff]
    %v35 = vld [vmem:[%s2 + $0x20] sm:$0xff]
    %v36 = vld [vmem:[%s2 + $0x28] sm:$0xff]
    %v37 = vld [vmem:[%s2 + $0x30] sm:$0xff]
    %v38 = vld [vmem:[%s2 + $0x38] sm:$0xff]
    %v39 = vld [vmem:[%s2 + $0x40] sm:$0xff]
    %v40 = vld [vmem:[%s2 + $0x48] sm:$0xff]
    %v41 = vld [vmem:[%s2 + $0x50] sm:$0xff]
    %v42 = vld [vmem:[%s2 + $0x58] sm:$0xff]
    %v43 = vld [vmem:[%s2 + $0x60] sm:$0xff]
    %v44 = vld [vmem:[%s2 + $0x68] sm:$0xff]
    %v45 = vld [vmem:[%s2 + $0x70] sm:$0xff]
    %v46 = vld [vmem:[%s2 + $0x78] sm:$0xff]
    %v47 = vld [vmem:[%s2 + $0x80] sm:$0xff]
    %v48 = vld [vmem:[%s2 + $0x88] sm:$0xff]
    %v49 = vld [vmem:[%s2 + $0x90] sm:$0xff]
    %v50 = vld [vmem:[%s2 + $0x98] sm:$0xff]
    %v51 = vld [vmem:[%s2 + $0xa0] sm:$0xff]
    %v52 = vld [vmem:[%s2 + $0xa8] sm:$0xff]
    %v53 = vld [vmem:[%s2 + $0xb0] sm:$0xff]
    %v54 = vld [vmem:[%s2 + $0xb8] sm:$0xff]
    %v55 = vld [vmem:[%s2 + $0xc0] sm:$0xff]
    %v56 = vld [vmem:[%s2 + $0xc8] sm:$0xff]
    %v57 = vld [vmem:[%s2 + $0xd0] sm:$0xff]
    %v58 = vld [vmem:[%s2 + $0xd8] sm:$0xff]
    %v59 = vld [vmem:[%s2 + $0xe0] sm:$0xff]
    %v60 = vld [vmem:[%s2 + $0xe8] sm:$0xff]
    %v61 = vld [vmem:[%s2 + $0xf0] sm:$0xff]
    %v62 = vld [vmem:[%s2 + $0xf8] sm:$0xff]
    %64 = vset.pattern.permute.xlu0 0
    %65 = vperm.xlu0 %64, %v22
    %v66 = vpop.permute.xlu0 %65
    %v68 = vmul.f32 %v66, %v18
    %v69 = vlaneseq
    %v70 = vshrl.u32 %v69, 7
    %v71 = vsub.s32 0, %v70
    %v72 = vrot.slane %v30, %v71
    %73 = vmatprep.subr.mxu0 0.0
    %74 = vmatpush1.msra.mxu0 %v46
    %75 = vmatprep.subr.mxu0 0.0
    %76 = vmatpush1.msra.mxu0 %v45
    %77 = vmatprep.subr.mxu0 0.0
    %78 = vmatpush1.msra.mxu0 %v44
    %79 = vmatprep.subr.mxu0 0.0
    %80 = vmatpush1.msra.mxu0 %v43
    %81 = vmatprep.subr.mxu0 0.0
    %82 = vmatpush1.msra.mxu0 %v42
    %83 = vmatprep.subr.mxu0 0.0
    %84 = vmatpush1.msra.mxu0 %v41
    %85 = vmatprep.subr.mxu0 0.0
    %86 = vmatpush1.msra.mxu0 %v40
    %87 = vmatprep.subr.mxu0 0.0
    %88 = vmatpush1.msra.mxu0 %v39
    %89 = vmatprep.subr.mxu0 0.0
    %90 = vmatpush1.msra.mxu0 %v38
    %91 = vmatprep.subr.mxu0 0.0
    %92 = vmatpush1.msra.mxu0 %v37
    %93 = vmatprep.subr.mxu0 0.0
    %94 = vmatpush1.msra.mxu0 %v36
    %95 = vmatprep.subr.mxu0 0.0
    %96 = vmatpush1.msra.mxu0 %v35
    %97 = vmatprep.subr.mxu0 0.0
    %98 = vmatpush1.msra.mxu0 %v34
    %99 = vmatprep.subr.mxu0 0.0
    %100 = vmatpush1.msra.mxu0 %v33
    %101 = vmatprep.subr.mxu0 0.0
    %102 = vmatpush1.msra.mxu0 %v32
    %103 = vmatprep.subr.mxu0 0.0
    %104 = vmatpush1.msra.mxu0 %v31
    %105 = vmatprep.subr.mxu0 0.0
    %106 = vmatpush2.msra.mxu0 0.0
    %107 = vmatprep.subr.mxu0 0.0
    %108 = vmatpush2.msra.mxu0 0.0
    %109 = vmatprep.subr.mxu0 0.0
    %110 = vmatpush2.msra.mxu0 0.0
    %111 = vmatprep.subr.mxu0 0.0
    %112 = vmatpush2.msra.mxu0 0.0
    %113 = vmatprep.subr.mxu0 0.0
    %114 = vmatpush2.msra.mxu0 0.0
    %115 = vmatprep.subr.mxu0 0.0
    %116 = vmatpush2.msra.mxu0 0.0
    %117 = vmatprep.subr.mxu0 0.0
    %118 = vmatpush2.msra.mxu0 0.0
    %119 = vmatprep.subr.mxu0 0.0
    %120 = vmatpush2.msra.mxu0 0.0
    %121 = vmatprep.subr.mxu0 0.0
    %122 = vmatpush2.msra.mxu0 0.0
    %123 = vmatprep.subr.mxu0 0.0
    %124 = vmatpush2.msra.mxu0 0.0
    %125 = vmatprep.subr.mxu0 0.0
    %126 = vmatpush2.msra.mxu0 0.0
    %127 = vmatprep.subr.mxu0 0.0
    %128 = vmatpush2.msra.mxu0 0.0
    %129 = vmatprep.subr.mxu0 0.0
    %130 = vmatpush2.msra.mxu0 0.0
    %131 = vmatprep.subr.mxu0 0.0
    %132 = vmatpush2.msra.mxu0 0.0
    %133 = vmatprep.subr.mxu0 0.0
    %134 = vmatpush2.msra.mxu0 0.0
    %135 = vmatprep.subr.mxu0 0.0
    %136 = vmatpush2.msra.mxu0 0.0
    %137 = vmatprep.mubr.f32.mxu0 0.0
    %138 = vmatmul.mubr.f32.gmra.mxu0 %v68
    %v139 = vpop.f32.mrf.mxu0
    %v140 = vadd.f32 %v72, %v139
    %v141 = vpop.f32.mrf.mxu0
    %142 = vdwg.mxu0
    %144 = vset.pattern.permute.xlu0 0
    %145 = vperm.xlu0 %144, %v29
    %v146 = vpop.permute.xlu0 %145
    %v148 = vlaneseq
    %v149 = vshrl.u32 %v148, 7
    %v150 = vsub.s32 1, %v149
    %v151 = vrot.slane %v30, %v150
    %v152 = vmul.f32 %v146, %v151
    %v153 = vadd.f32 %v140, %v152
    %v154 = vsub.f32 0.0, %v153
    %v155 = vmul.f32 %v154, 1.442695
    %v156 = vpow.pop %v155
    %v157 = vadd.f32 %v156, 1.0
    %v158 = vrcp.pop %v157
    %v159 = vmul.f32 %v153, %v158
    %v160 = vlaneseq
    %v161 = vshrl.u32 %v160, 7
    %v162 = vsub.s32 2, %v161
    %v163 = vrot.slane %v30, %v162
    %164 = vmatprep.subr.mxu0 0.0
    %165 = vmatpush1.msra.mxu0 %v62
    %166 = vmatprep.subr.mxu0 0.0
    %167 = vmatpush1.msra.mxu0 %v61
    %168 = vmatprep.subr.mxu0 0.0
    %169 = vmatpush1.msra.mxu0 %v60
    %170 = vmatprep.subr.mxu0 0.0
    %171 = vmatpush1.msra.mxu0 %v59
    %172 = vmatprep.subr.mxu0 0.0
    %173 = vmatpush1.msra.mxu0 %v58
    %174 = vmatprep.subr.mxu0 0.0
    %175 = vmatpush1.msra.mxu0 %v57
    %176 = vmatprep.subr.mxu0 0.0
    %177 = vmatpush1.msra.mxu0 %v56
    %178 = vmatprep.subr.mxu0 0.0
    %179 = vmatpush1.msra.mxu0 %v55
    %180 = vmatprep.subr.mxu0 0.0
    %181 = vmatpush1.msra.mxu0 %v54
    %182 = vmatprep.subr.mxu0 0.0
    %183 = vmatpush1.msra.mxu0 %v53
    %184 = vmatprep.subr.mxu0 0.0
    %185 = vmatpush1.msra.mxu0 %v52
    %186 = vmatprep.subr.mxu0 0.0
    %187 = vmatpush1.msra.mxu0 %v51
    %188 = vmatprep.subr.mxu0 0.0
    %189 = vmatpush1.msra.mxu0 %v50
    %190 = vmatprep.subr.mxu0 0.0
    %191 = vmatpush1.msra.mxu0 %v49
    %192 = vmatprep.subr.mxu0 0.0
    %193 = vmatpush1.msra.mxu0 %v48
    %194 = vmatprep.subr.mxu0 0.0
    %195 = vmatpush1.msra.mxu0 %v47
    %196 = vmatprep.subr.mxu0 0.0
    %197 = vmatpush2.msra.mxu0 0.0
    %198 = vmatprep.subr.mxu0 0.0
    %199 = vmatpush2.msra.mxu0 0.0
    %200 = vmatprep.subr.mxu0 0.0
    %201 = vmatpush2.msra.mxu0 0.0
    %202 = vmatprep.subr.mxu0 0.0
    %203 = vmatpush2.msra.mxu0 0.0
    %204 = vmatprep.subr.mxu0 0.0
    %205 = vmatpush2.msra.mxu0 0.0
    %206 = vmatprep.subr.mxu0 0.0
    %207 = vmatpush2.msra.mxu0 0.0
    %208 = vmatprep.subr.mxu0 0.0
    %209 = vmatpush2.msra.mxu0 0.0
    %210 = vmatprep.subr.mxu0 0.0
    %211 = vmatpush2.msra.mxu0 0.0
    %212 = vmatprep.subr.mxu0 0.0
    %213 = vmatpush2.msra.mxu0 0.0
    %214 = vmatprep.subr.mxu0 0.0
    %215 = vmatpush2.msra.mxu0 0.0
    %216 = vmatprep.subr.mxu0 0.0
    %217 = vmatpush2.msra.mxu0 0.0
    %218 = vmatprep.subr.mxu0 0.0
    %219 = vmatpush2.msra.mxu0 0.0
    %220 = vmatprep.subr.mxu0 0.0
    %221 = vmatpush2.msra.mxu0 0.0
    %222 = vmatprep.subr.mxu0 0.0
    %223 = vmatpush2.msra.mxu0 0.0
    %224 = vmatprep.subr.mxu0 0.0
    %225 = vmatpush2.msra.mxu0 0.0
    %226 = vmatprep.subr.mxu0 0.0
    %227 = vmatpush2.msra.mxu0 0.0
    %228 = vmatprep.mubr.f32.mxu0 0.0
    %229 = vmatmul.mubr.f32.gmra.mxu0 %v159
    %v230 = vpop.f32.mrf.mxu0
    %v231 = vadd.f32 %v163, %v230
    %v232 = vpop.f32.mrf.mxu0
    %233 = vdwg.mxu0
    %235 = vset.pattern.permute.xlu0 0
    %236 = vperm.xlu0 %235, %v26
    %v237 = vpop.permute.xlu0 %236
    %v239 = vmul.f32 %v237, %v231
    %241 = vset.pattern.permute.xlu0 0
    %242 = vperm.xlu0 %241, %v24
    %v243 = vpop.permute.xlu0 %242
    %v245 = vmul.f32 %v243, %v18
    %v246 = vadd.f32 %v239, %v245
    %247 = vst [vmem:[#allocation2] sm:$0xff] %v246
    // Predicated region
    $region18: #{edm_forward.1} parent=1 // pred_check
      _
    $region19: #{edm_forward.1} parent=1 // pred_check_branch
      %249 = sbr.rel (0) target = $region21
    $region20: #{edm_forward.1} parent=1 // pred_region
      %s251 = ssub.s32 128, 128
      %252 = vsyncadd [#allocation3], %s251
      %s254 = sshll.u32 [#allocation2], 4
      %s255 = int_to_ptr.vmem [resolvable:$true] %s254
      %257 = dma.vmem_to_hbm [thread:$0]  %s255, 128, %s4, [#allocation3]
    $region21: #{edm_forward.1} parent=1 // pred_fallthru
      _
    // Predicated region
    $region22: #{edm_forward.1} parent=1 // pred_check
      _
    $region23: #{edm_forward.1} parent=1 // pred_check_branch
      %259 = sbr.rel (0) target = $region25
    $region24: #{edm_forward.1} parent=1 // pred_region
      %260 = dma.done [#allocation3], 128
    $region25: #{edm_forward.1} parent=1 // pred_fallthru
      _
    %261 = vsyncpa [#allocation3], 1

</llo_original>
